<compile_context>
chip_gen: v7x
topology: tpu7x:2x2x1
jax: 0.10.0
libtpu: 0.0.40
codegen_flags: <defaults>
</compile_context>

<pallas_src>
import functools

import jax
import jax.numpy as jnp
from jax.experimental import pallas as pl
from jax.experimental.pallas import tpu as pltpu


def _decoder_kernel(z_ref, w1_ref, b1_ref, w2_ref, b2_ref, out_ref):
    # fc1: (TM, L) @ (L, H) + (1, H), f32 accumulation on the MXU.
    h = jnp.dot(z_ref[...], w1_ref[...], preferred_element_type=jnp.float32)
    # Bias + ReLU stay in f32 (v5e VPU has no native bf16 ALU path).
    h = jnp.maximum(h + b1_ref[...], 0.0)
    # fc2: (TM, H) @ (H, O) + (1, O)
    o = jnp.dot(h, w2_ref[...], preferred_element_type=jnp.float32)
    out_ref[...] = (o + b2_ref[...]).astype(out_ref.dtype)


@functools.partial(jax.jit, static_argnames=("block_b",))
def decoder_forward(z, w1, b1, w2, b2, *, block_b=512):
    """Fused decoder forward.

    z : (B, latent_dim)
    w1: (latent_dim, nhidden)   b1: (1, nhidden)
    w2: (nhidden, obs_dim)      b2: (1, obs_dim)
    returns (B, obs_dim) float32
    """
    B, L = z.shape
    H = w1.shape[1]
    O = w2.shape[1]

    if B <= block_b:
        # Single VMEM block: drop the grid machinery entirely (no pipeline
        # prologue/epilogue, ~0.35 us/step saved on a sub-microsecond kernel).
        return pl.pallas_call(
            _decoder_kernel,
            out_shape=jax.ShapeDtypeStruct((B, O), jnp.float32),
        )(z, w1, b1, w2, b2)

    # Large batch: tile the batch axis; keep weights/biases resident in VMEM.
    num_blocks = pl.cdiv(B, block_b)
    B_padded = num_blocks * block_b
    if B_padded != B:
        z = jnp.pad(z, ((0, B_padded - B), (0, 0)))

    out = pl.pallas_call(
        _decoder_kernel,
        out_shape=jax.ShapeDtypeStruct((B_padded, O), jnp.float32),
        grid=(num_blocks,),
        in_specs=[
            pl.BlockSpec((block_b, L), lambda i: (i, 0)),   # z tiles (pipelined)
            pl.BlockSpec((L, H), lambda i: (0, 0)),         # resident weights
            pl.BlockSpec((1, H), lambda i: (0, 0)),
            pl.BlockSpec((H, O), lambda i: (0, 0)),
            pl.BlockSpec((1, O), lambda i: (0, 0)),
        ],
        out_specs=pl.BlockSpec((block_b, O), lambda i: (i, 0)),
        compiler_params=pltpu.CompilerParams(
            # Batch tiles are independent -> shard across TCs on v7x.
            dimension_semantics=("parallel",)),
    )(z, w1, b1, w2, b2)
    return out[:B]


def init_params(key, latent_dim=4, nhidden=20, obs_dim=2):
    """Deterministic init mimicking nn.Linear's U(-1/sqrt(fan_in), ...)."""
    k1, k2, k3, k4 = jax.random.split(key, 4)
    lim1 = 1.0 / jnp.sqrt(latent_dim)
    lim2 = 1.0 / jnp.sqrt(nhidden)
    # Stored transposed vs PyTorch: (in_features, out_features).
    w1 = jax.random.uniform(k1, (latent_dim, nhidden), jnp.float32, -lim1, lim1)
    b1 = jax.random.uniform(k2, (1, nhidden), jnp.float32, -lim1, lim1)
    w2 = jax.random.uniform(k3, (nhidden, obs_dim), jnp.float32, -lim2, lim2)
    b2 = jax.random.uniform(k4, (1, obs_dim), jnp.float32, -lim2, lim2)
    return w1, b1, w2, b2


def _reference(z, w1, b1, w2, b2):
    return jnp.maximum(z @ w1 + b1, 0.0) @ w2 + b2


if __name__ == "__main__":
    key = jax.random.PRNGKey(0)
    kz, kzb, kp = jax.random.split(key, 3)

    latent_dim, nhidden, obs_dim = 4, 20, 2
    w1, b1, w2, b2 = init_params(kp, latent_dim, nhidden, obs_dim)

    # --- small batch: single-block path (matches the reference module usage) ---
    batch = 8
    z = jax.random.normal(kz, (batch, latent_dim), jnp.float32)
    out = jax.block_until_ready(decoder_forward(z, w1, b1, w2, b2))
    ref = _reference(z, w1, b1, w2, b2)
    assert out.shape == (batch, obs_dim)
    assert jnp.allclose(out, ref, atol=1e-5, rtol=1e-5)

    # --- large batch: tiled, pipelined, parallel-grid path (amortized launch) ---
    big_batch = 1037  # not a multiple of block_b -> exercises padding path
    zb = jax.random.normal(kzb, (big_batch, latent_dim), jnp.float32)
    out_b = jax.block_until_ready(
        decoder_forward(zb, w1, b1, w2, b2, block_b=512))
    ref_b = _reference(zb, w1, b1, w2, b2)
    assert out_b.shape == (big_batch, obs_dim)
    assert jnp.allclose(out_b, ref_b, atol=1e-5, rtol=1e-5)

    print("KERNEL_OK")
</pallas_src>

<mosaic_0001>
module attributes {stable_mosaic.version = 11 : i64} {
  func.func @_decoder_kernel(%arg0: memref<8x4xf32, #tpu.memory_space<vmem>>, %arg1: memref<4x20xf32, #tpu.memory_space<vmem>>, %arg2: memref<1x20xf32, #tpu.memory_space<vmem>>, %arg3: memref<20x2xf32, #tpu.memory_space<vmem>>, %arg4: memref<1x2xf32, #tpu.memory_space<vmem>>, %arg5: memref<8x2xf32, #tpu.memory_space<vmem>>) attributes {dimension_semantics = [], scalar_prefetch = 0 : i64, scratch_operands = 0 : i64, tpu.core_type = #tpu.core_type<tc>} {
    %c0 = arith.constant 0 : index
    %c0_0 = arith.constant 0 : index
    %0 = vector.load %arg0[%c0, %c0_0] : memref<8x4xf32, #tpu.memory_space<vmem>>, vector<8x4xf32>
    %c0_1 = arith.constant 0 : index
    %c0_2 = arith.constant 0 : index
    %1 = vector.load %arg1[%c0_1, %c0_2] : memref<4x20xf32, #tpu.memory_space<vmem>>, vector<4x20xf32>
    %cst = arith.constant dense<0.000000e+00> : vector<8x20xf32>
    %2 = tpu.matmul %0, %1, %cst {dimension_numbers = #tpu.dot_dimension_numbers<[1], [0], [0], [1], [0, 0, 1, 1], [], []>} : vector<8x4xf32>, vector<4x20xf32>, vector<8x20xf32> -> vector<8x20xf32>
    %c0_3 = arith.constant 0 : index
    %c0_4 = arith.constant 0 : index
    %3 = vector.load %arg2[%c0_3, %c0_4] : memref<1x20xf32, #tpu.memory_space<vmem>>, vector<1x20xf32>
    %4 = vector.broadcast %3 : vector<1x20xf32> to vector<8x20xf32>
    %5 = arith.addf %2, %4 : vector<8x20xf32>
    %cst_5 = arith.constant 0.000000e+00 : f32
    %6 = vector.broadcast %cst_5 : f32 to vector<8x20xf32>
    %7 = arith.maximumf %5, %6 : vector<8x20xf32>
    %c0_6 = arith.constant 0 : index
    %c0_7 = arith.constant 0 : index
    %8 = vector.load %arg3[%c0_6, %c0_7] : memref<20x2xf32, #tpu.memory_space<vmem>>, vector<20x2xf32>
    %cst_8 = arith.constant dense<0.000000e+00> : vector<8x2xf32>
    %9 = tpu.matmul %7, %8, %cst_8 {dimension_numbers = #tpu.dot_dimension_numbers<[1], [0], [0], [1], [0, 0, 1, 1], [], []>} : vector<8x20xf32>, vector<20x2xf32>, vector<8x2xf32> -> vector<8x2xf32>
    %c0_9 = arith.constant 0 : index
    %c0_10 = arith.constant 0 : index
    %10 = vector.load %arg4[%c0_9, %c0_10] : memref<1x2xf32, #tpu.memory_space<vmem>>, vector<1x2xf32>
    %11 = vector.broadcast %10 : vector<1x2xf32> to vector<8x2xf32>
    %12 = arith.addf %9, %11 : vector<8x2xf32>
    %c0_11 = arith.constant 0 : index
    %c0_12 = arith.constant 0 : index
    %13 = vector.load %arg5[%c0_11, %c0_12] : memref<8x2xf32, #tpu.memory_space<vmem>>, vector<8x2xf32>
    tpu.vector_store %arg5[%c0_11, %c0_12], %12 {strides = array<i32>} : memref<8x2xf32, #tpu.memory_space<vmem>>, vector<8x2xf32>,
    return
  }
}

</mosaic_0001>

<llo_original>
// kernel: decoder_forward.1
$region0: #{decoder_forward.1}
  #allocation0 [shape = 'u32[]', space=smem, size = 0x4, offset = 0x4, fixed_abs, tag = 'smem constant byte address 0x4 - core index']
  #allocation1 [shape = 'u32[144,128]{1,0:T(1,128)}', space=vmem, size = 0x12000, scoped, tag = 'internal scratch']
  %s0 = inlined_call_operand.vmem [shape: f32[8,4], index: 0, kind: input, shape index: {}]
  %s1 = inlined_call_operand.vmem [shape: f32[4,20], index: 1, kind: input, shape index: {}]
  %s2 = inlined_call_operand.vmem [shape: f32[1,20], index: 2, kind: input, shape index: {}]
  %s3 = inlined_call_operand.vmem [shape: f32[20,2], index: 3, kind: input, shape index: {}]
  %s4 = inlined_call_operand.vmem [shape: f32[1,2], index: 4, kind: input, shape index: {}]
  %s5 = inlined_call_operand.vmem [shape: f32[8,2], index: 5, kind: output, shape index: {}]
  %s6 = sld [smem:[#allocation0]]
  $region30: #{decoder_forward.1} parent=0
    _
  %s8 = ssub.s32 1, %s6
  %s9 = scalar_select 0, %s8, %s6
  // Predicated region
  $region2: #{decoder_forward.1} parent=0 // pred_check
    _
  $region3: #{decoder_forward.1} parent=0 // pred_check_branch
    %11 = sbr.rel (0) target = $region5
  $region4: #{decoder_forward.1} parent=0 // pred_region
    _
  $region5: #{decoder_forward.1} parent=0 // pred_fallthru
    _
  // Predicated region
  $region6: #{decoder_forward.1} parent=0 // pred_check
    _
  $region7: #{decoder_forward.1} parent=0 // pred_check_branch
    %13 = sbr.rel (0) target = $region9
  $region8: #{decoder_forward.1} parent=0 // pred_region
    _
  $region9: #{decoder_forward.1} parent=0 // pred_fallthru
    _
  // Predicated region
  $region10: #{decoder_forward.1} parent=0 // pred_check
    _
  $region11: #{decoder_forward.1} parent=0 // pred_check_branch
    %15 = sbr.rel (0) target = $region13
  $region12: #{decoder_forward.1} parent=0 // pred_region
    _
  $region13: #{decoder_forward.1} parent=0 // pred_fallthru
    _
  // Predicated region
  $region14: #{decoder_forward.1} parent=0 // pred_check
    _
  $region15: #{decoder_forward.1} parent=0 // pred_check_branch
    %17 = sbr.rel (0) target = $region17
  $region16: #{decoder_forward.1} parent=0 // pred_region
    _
  $region17: #{decoder_forward.1} parent=0 // pred_fallthru
    _
  // Predicated region
  $region18: #{decoder_forward.1} parent=0 // pred_check
    _
  $region19: #{decoder_forward.1} parent=0 // pred_check_branch
    %19 = sbr.rel (0) target = $region21
  $region20: #{decoder_forward.1} parent=0 // pred_region
    _
  $region21: #{decoder_forward.1} parent=0 // pred_fallthru
    _
  %v20 = vld [vmem:[%s0] sm:$0xff]
  %v21 = vld [vmem:[%s1] sm:$0xf]
  %v22 = vld [vmem:[%s2] sm:$0x1]
  %v24 = vlaneseq
  %v25 = vshrl.u32 %v24, 7
  %v26 = vsub.s32 0, %v25
  %v27 = vrot.slane %v22, %v26
  %vm29 = vcmask 31744
  %v31 = vsel %vm29, %v20, 0
  %vm33 = vcmask 1043456
  %v35 = vsel %vm33, %v21, 0
  %37 = vmatprep.subr.mxu0 0.0
  %38 = vmatpush1.msra.mxu0 %v35
  %39 = vmatprep.subr.mxu0 0.0
  %40 = vmatpush1.msra.mxu0 0.0
  %41 = vmatprep.subr.mxu0 0.0
  %42 = vmatpush1.msra.mxu0 0.0
  %43 = vmatprep.subr.mxu0 0.0
  %44 = vmatpush1.msra.mxu0 0.0
  %45 = vmatprep.subr.mxu0 0.0
  %46 = vmatpush1.msra.mxu0 0.0
  %47 = vmatprep.subr.mxu0 0.0
  %48 = vmatpush1.msra.mxu0 0.0
  %49 = vmatprep.subr.mxu0 0.0
  %50 = vmatpush1.msra.mxu0 0.0
  %51 = vmatprep.subr.mxu0 0.0
  %52 = vmatpush1.msra.mxu0 0.0
  %53 = vmatprep.subr.mxu0 0.0
  %54 = vmatpush1.msra.mxu0 0.0
  %55 = vmatprep.subr.mxu0 0.0
  %56 = vmatpush1.msra.mxu0 0.0
  %57 = vmatprep.subr.mxu0 0.0
  %58 = vmatpush1.msra.mxu0 0.0
  %59 = vmatprep.subr.mxu0 0.0
  %60 = vmatpush1.msra.mxu0 0.0
  %61 = vmatprep.subr.mxu0 0.0
  %62 = vmatpush1.msra.mxu0 0.0
  %63 = vmatprep.subr.mxu0 0.0
  %64 = vmatpush1.msra.mxu0 0.0
  %65 = vmatprep.subr.mxu0 0.0
  %66 = vmatpush1.msra.mxu0 0.0
  %67 = vmatprep.subr.mxu0 0.0
  %68 = vmatpush1.msra.mxu0 0.0
  %69 = vmatprep.subr.mxu0 0.0
  %70 = vmatpush1.msra.mxu0 0.0
  %71 = vmatprep.subr.mxu0 0.0
  %72 = vmatpush1.msra.mxu0 0.0
  %73 = vmatprep.subr.mxu0 0.0
  %74 = vmatpush1.msra.mxu0 0.0
  %75 = vmatprep.subr.mxu0 0.0
  %76 = vmatpush1.msra.mxu0 0.0
  %77 = vmatprep.subr.mxu0 0.0
  %78 = vmatpush1.msra.mxu0 0.0
  %79 = vmatprep.subr.mxu0 0.0
  %80 = vmatpush1.msra.mxu0 0.0
  %81 = vmatprep.subr.mxu0 0.0
  %82 = vmatpush1.msra.mxu0 0.0
  %83 = vmatprep.subr.mxu0 0.0
  %84 = vmatpush1.msra.mxu0 0.0
  %85 = vmatprep.subr.mxu0 0.0
  %86 = vmatpush1.msra.mxu0 0.0
  %87 = vmatprep.subr.mxu0 0.0
  %88 = vmatpush1.msra.mxu0 0.0
  %89 = vmatprep.subr.mxu0 0.0
  %90 = vmatpush1.msra.mxu0 0.0
  %91 = vmatprep.subr.mxu0 0.0
  %92 = vmatpush1.msra.mxu0 0.0
  %93 = vmatprep.subr.mxu0 0.0
  %94 = vmatpush1.msra.mxu0 0.0
  %95 = vmatprep.subr.mxu0 0.0
  %96 = vmatpush1.msra.mxu0 0.0
  %97 = vmatprep.subr.mxu0 0.0
  %98 = vmatpush1.msra.mxu0 0.0
  %99 = vmatprep.subr.mxu0 0.0
  %100 = vmatpush1.msra.mxu0 0.0
  %101 = vmatprep.mubr.f32.mxu0 0.0
  %102 = vmatmul.mubr.f32.gmra.mrb[0].mxu0 %v31
  %v103 = vpop.f32.mrb[0].mxu0
  %v104 = vadd.f32 %v27, %v103
  %v105 = vpop.f32.mrb[0].mxu0
  %106 = vdwg.mxu0
  %v107 = vmax.f32 %v104, 0.0
  %v108 = vld [vmem:[%s3] sm:$0xff]
  %v109 = vld [vmem:[%s3 + $0x8] sm:$0xff]
  %v110 = vld [vmem:[%s3 + $0x10] sm:$0xf]
  %v111 = vld [vmem:[%s4] sm:$0x1]
  %v113 = vlaneseq
  %v114 = vshrl.u32 %v113, 7
  %v115 = vsub.s32 0, %v114
  %v116 = vrot.slane %v111, %v115
  %vm118 = vcmask 162816
  %v120 = vsel %vm118, %v107, 0
  %v123 = vsel %vm33, %v110, 0
  %125 = vmatprep.subr.mxu0 0.0
  %126 = vmatpush1.msra.mxu0 %v108
  %127 = vmatprep.subr.mxu0 0.0
  %128 = vmatpush1.msra.mxu0 %v109
  %129 = vmatprep.subr.mxu0 0.0
  %130 = vmatpush1.msra.mxu0 %v123
  %131 = vmatprep.subr.mxu0 0.0
  %132 = vmatpush1.msra.mxu0 0.0
  %133 = vmatprep.subr.mxu0 0.0
  %134 = vmatpush1.msra.mxu0 0.0
  %135 = vmatprep.subr.mxu0 0.0
  %136 = vmatpush1.msra.mxu0 0.0
  %137 = vmatprep.subr.mxu0 0.0
  %138 = vmatpush1.msra.mxu0 0.0
  %139 = vmatprep.subr.mxu0 0.0
  %140 = vmatpush1.msra.mxu0 0.0
  %141 = vmatprep.subr.mxu0 0.0
  %142 = vmatpush1.msra.mxu0 0.0
  %143 = vmatprep.subr.mxu0 0.0
  %144 = vmatpush1.msra.mxu0 0.0
  %145 = vmatprep.subr.mxu0 0.0
  %146 = vmatpush1.msra.mxu0 0.0
  %147 = vmatprep.subr.mxu0 0.0
  %148 = vmatpush1.msra.mxu0 0.0
  %149 = vmatprep.subr.mxu0 0.0
  %150 = vmatpush1.msra.mxu0 0.0
  %151 = vmatprep.subr.mxu0 0.0
  %152 = vmatpush1.msra.mxu0 0.0
  %153 = vmatprep.subr.mxu0 0.0
  %154 = vmatpush1.msra.mxu0 0.0
  %155 = vmatprep.subr.mxu0 0.0
  %156 = vmatpush1.msra.mxu0 0.0
  %157 = vmatprep.subr.mxu0 0.0
  %158 = vmatpush1.msra.mxu0 0.0
  %159 = vmatprep.subr.mxu0 0.0
  %160 = vmatpush1.msra.mxu0 0.0
  %161 = vmatprep.subr.mxu0 0.0
  %162 = vmatpush1.msra.mxu0 0.0
  %163 = vmatprep.subr.mxu0 0.0
  %164 = vmatpush1.msra.mxu0 0.0
  %165 = vmatprep.subr.mxu0 0.0
  %166 = vmatpush1.msra.mxu0 0.0
  %167 = vmatprep.subr.mxu0 0.0
  %168 = vmatpush1.msra.mxu0 0.0
  %169 = vmatprep.subr.mxu0 0.0
  %170 = vmatpush1.msra.mxu0 0.0
  %171 = vmatprep.subr.mxu0 0.0
  %172 = vmatpush1.msra.mxu0 0.0
  %173 = vmatprep.subr.mxu0 0.0
  %174 = vmatpush1.msra.mxu0 0.0
  %175 = vmatprep.subr.mxu0 0.0
  %176 = vmatpush1.msra.mxu0 0.0
  %177 = vmatprep.subr.mxu0 0.0
  %178 = vmatpush1.msra.mxu0 0.0
  %179 = vmatprep.subr.mxu0 0.0
  %180 = vmatpush1.msra.mxu0 0.0
  %181 = vmatprep.subr.mxu0 0.0
  %182 = vmatpush1.msra.mxu0 0.0
  %183 = vmatprep.subr.mxu0 0.0
  %184 = vmatpush1.msra.mxu0 0.0
  %185 = vmatprep.subr.mxu0 0.0
  %186 = vmatpush1.msra.mxu0 0.0
  %187 = vmatprep.subr.mxu0 0.0
  %188 = vmatpush1.msra.mxu0 0.0
  %189 = vmatprep.mubr.f32.mxu0 0.0
  %190 = vmatmul.mubr.f32.gmra.mrb[0].mxu0 %v120
  %v191 = vpop.f32.mrb[0].mxu0
  %v192 = vadd.f32 %v116, %v191
  %v193 = vpop.f32.mrb[0].mxu0
  %194 = vdwg.mxu0
  %vm195 = vcmask 15360
  %196 = vst.msk [vmem:[%s5] sm:$0xff] %vm195, %v192
  // Predicated region
  $region22: #{decoder_forward.1} parent=0 // pred_check
    _
  $region23: #{decoder_forward.1} parent=0 // pred_check_branch
    %198 = sbr.rel (0) target = $region25
  $region24: #{decoder_forward.1} parent=0 // pred_region
    _
  $region25: #{decoder_forward.1} parent=0 // pred_fallthru
    _
  // Predicated region
  $region26: #{decoder_forward.1} parent=0 // pred_check
    _
  $region27: #{decoder_forward.1} parent=0 // pred_check_branch
    %200 = sbr.rel (0) target = $region29
  $region28: #{decoder_forward.1} parent=0 // pred_region
    _
  $region29: #{decoder_forward.1} parent=0 // pred_fallthru
    _

</llo_original>
